<compile_context>
chip_gen: v7x
topology: tpu7x:2x2x1
jax: 0.10.0
libtpu: 0.0.40
codegen_flags: <defaults>
</compile_context>

<pallas_src>
import functools
import numpy as np
import jax
import jax.numpy as jnp
from jax.experimental import pallas as pl
from jax.experimental.pallas import tpu as pltpu

POOL_SIZES = (1, 2, 3, 6)
S2_TOTAL = sum(s * s for s in POOL_SIZES)  # 50


# ---------------------------------------------------------------------------
# Host-side construction of the low-rank spatial operators
# ---------------------------------------------------------------------------
def adaptive_pool_matrix(in_size: int, out_size: int) -> np.ndarray:
    """Row-stochastic matrix P (out, in) implementing nn.AdaptiveAvgPool1d."""
    P = np.zeros((out_size, in_size), np.float32)
    for i in range(out_size):
        s = (i * in_size) // out_size
        e = ((i + 1) * in_size + out_size - 1) // out_size  # ceil
        P[i, s:e] = 1.0 / (e - s)
    return P


def bilinear_upsample_matrix(out_size: int, in_size: int) -> np.ndarray:
    """Matrix U (out, in) implementing F.interpolate bilinear, align_corners=False."""
    U = np.zeros((out_size, in_size), np.float32)
    scale = in_size / out_size
    for y in range(out_size):
        src = scale * (y + 0.5) - 0.5
        src = max(src, 0.0)  # PyTorch clamps negative source indices to 0
        i0 = int(np.floor(src))
        i1 = i0 + 1 if i0 < in_size - 1 else i0
        lam = src - i0
        U[y, i0] += 1.0 - lam
        U[y, i1] += lam
    return U


def _round_up(x: int, m: int) -> int:
    return (x + m - 1) // m * m


# ---------------------------------------------------------------------------
# Pass 1: pooled = feat @ P^T (accumulated over HW tiles), then fused conv
# ---------------------------------------------------------------------------
def ppm_pool_conv_kernel(feat_ref, pt_ref, w_ref, mask_ref, convm_ref, acc_ref):
    t = pl.program_id(1)

    @pl.when(t == 0)
    def _():
        acc_ref[...] = jnp.zeros_like(acc_ref)

    # (C, T) @ (T, S2) -> (C, S2), f32 accumulation.
    acc_ref[...] += jnp.dot(feat_ref[0], pt_ref[...],
                            preferred_element_type=jnp.float32)

    @pl.when(t == pl.num_programs(1) - 1)
    def _():
        pooled = acc_ref[...].astype(w_ref.dtype)
        # Fused 4x 1x1-conv: one (C, C) @ (C, S2) matmul, then block-mask so
        # each level's rows only keep their own pooled columns.
        conv = jnp.dot(w_ref[...], pooled, preferred_element_type=jnp.float32)
        convm_ref[0] = (conv * mask_ref[...]).astype(convm_ref.dtype)


# ---------------------------------------------------------------------------
# Pass 2: passthrough copy + single (C,50)@(50,T) upsample per HW tile
# ---------------------------------------------------------------------------
def ppm_upsample_concat_kernel(feat_ref, convm_ref, u_ref, out_ref, *, C):
    out_ref[0, 0:C, :] = feat_ref[0].astype(out_ref.dtype)
    up = jnp.dot(convm_ref[0], u_ref[...], preferred_element_type=jnp.float32)
    out_ref[0, C:2 * C, :] = up.astype(out_ref.dtype)


# ---------------------------------------------------------------------------
# Wrapper
# ---------------------------------------------------------------------------
def pp_module_pallas(feature: jax.Array, conv_weights, *,
                     tile_hw: int = 512,
                     compute_dtype=jnp.float32) -> jax.Array:
    """feature: (B, C, H, W) float32, conv_weights: list of 4 arrays (C//4, C)."""
    B, C, H, W = feature.shape
    OC = C // 4
    assert 4 * OC == C, "channels must be divisible by 4"
    HW = H * W
    S2 = S2_TOTAL

    # Lane-dense HW tile (multiple of 128); pad HW with zeros so tiles divide it.
    T = min(_round_up(int(tile_hw), 128), _round_up(HW, 128))
    HW_pad = _round_up(HW, T)
    NT = HW_pad // T

    # Low-rank spatial factors per level (no O(HW^2) kron anymore).
    pt_blocks, u_blocks = [], []
    for s in POOL_SIZES:
        Ph = adaptive_pool_matrix(H, s)        # (s, H)
        Pw = adaptive_pool_matrix(W, s)        # (s, W)
        Uh = bilinear_upsample_matrix(H, s)    # (H, s)
        Uw = bilinear_upsample_matrix(W, s)    # (W, s)
        P2d = np.kron(Ph, Pw)                  # (s*s, HW)   pool operator
        U2d = np.kron(Uh, Uw)                  # (HW, s*s)   upsample operator
        pt_blocks.append(P2d.T)                # (HW, s*s)
        u_blocks.append(U2d.T)                 # (s*s, HW)
    PT = np.concatenate(pt_blocks, axis=1)     # (HW, 50)
    U = np.concatenate(u_blocks, axis=0)       # (50, HW)
    PT = np.pad(PT, ((0, HW_pad - HW), (0, 0)))
    U = np.pad(U, ((0, 0), (0, HW_pad - HW)))

    # Stacked conv weights (C, C) and the static block mask (C, 50).
    Wstk = np.concatenate([np.asarray(w, np.float32) for w in conv_weights], axis=0)
    mask = np.zeros((C, S2), np.float32)
    off = 0
    for k, s in enumerate(POOL_SIZES):
        mask[k * OC:(k + 1) * OC, off:off + s * s] = 1.0
        off += s * s

    cdt = compute_dtype
    feat2d = feature.reshape(B, C, HW).astype(cdt)
    feat2d = jnp.pad(feat2d, ((0, 0), (0, 0), (0, HW_pad - HW)))
    PT_j = jnp.asarray(PT).astype(cdt)
    U_j = jnp.asarray(U).astype(cdt)
    W_j = jnp.asarray(Wstk).astype(cdt)
    mask_j = jnp.asarray(mask, jnp.float32)

    # ---- Pass 1: pooled features + fused conv -> (B, C, 50) ----
    convm = pl.pallas_call(
        ppm_pool_conv_kernel,
        out_shape=jax.ShapeDtypeStruct((B, C, S2), cdt),
        grid_spec=pltpu.PrefetchScalarGridSpec(
            num_scalar_prefetch=0,
            grid=(B, NT),
            in_specs=[
                pl.BlockSpec((1, C, T), lambda b, t: (b, 0, t)),
                pl.BlockSpec((T, S2), lambda b, t: (t, 0)),
                pl.BlockSpec((C, C), lambda b, t: (0, 0)),
                pl.BlockSpec((C, S2), lambda b, t: (0, 0)),
            ],
            out_specs=pl.BlockSpec((1, C, S2), lambda b, t: (b, 0, 0)),
            scratch_shapes=[pltpu.VMEM((C, S2), jnp.float32)],
        ),
        compiler_params=pltpu.CompilerParams(
            dimension_semantics=("parallel", "arbitrary")),
    )(feat2d, PT_j, W_j, mask_j)

    # ---- Pass 2: passthrough + upsample + concat -> (B, 2C, HW_pad) ----
    kernel2 = functools.partial(ppm_upsample_concat_kernel, C=C)
    out = pl.pallas_call(
        kernel2,
        out_shape=jax.ShapeDtypeStruct((B, 2 * C, HW_pad), jnp.float32),
        grid_spec=pltpu.PrefetchScalarGridSpec(
            num_scalar_prefetch=0,
            grid=(B, NT),
            in_specs=[
                pl.BlockSpec((1, C, T), lambda b, t: (b, 0, t)),
                pl.BlockSpec((1, C, S2), lambda b, t: (b, 0, 0)),
                pl.BlockSpec((S2, T), lambda b, t: (0, t)),
            ],
            out_specs=pl.BlockSpec((1, 2 * C, T), lambda b, t: (b, 0, t)),
        ),
        compiler_params=pltpu.CompilerParams(
            dimension_semantics=("parallel", "parallel")),
    )(feat2d, convm, U_j)

    return out[:, :, :HW].reshape(B, 2 * C, H, W)


# ---------------------------------------------------------------------------
# Independent numpy reference (PyTorch semantics) for validation
# ---------------------------------------------------------------------------
def reference_ppm(feat: np.ndarray, conv_weights) -> np.ndarray:
    B, C, H, W = feat.shape
    OC = C // 4
    outs = [feat]
    for w, s in zip(conv_weights, POOL_SIZES):
        pooled = np.zeros((B, C, s, s), np.float32)
        for i in range(s):
            hs = (i * H) // s
            he = ((i + 1) * H + s - 1) // s
            for j in range(s):
                ws = (j * W) // s
                we = ((j + 1) * W + s - 1) // s
                pooled[:, :, i, j] = feat[:, :, hs:he, ws:we].mean(axis=(2, 3))
        conv = np.einsum('oc,bcij->boij', w, pooled).astype(np.float32)
        up = np.zeros((B, OC, H, W), np.float32)
        sch, scw = s / H, s / W
        for y in range(H):
            sy = max(sch * (y + 0.5) - 0.5, 0.0)
            y0 = int(np.floor(sy))
            y1 = y0 + 1 if y0 < s - 1 else y0
            ly = sy - y0
            for x in range(W):
                sx = max(scw * (x + 0.5) - 0.5, 0.0)
                x0 = int(np.floor(sx))
                x1 = x0 + 1 if x0 < s - 1 else x0
                lx = sx - x0
                up[:, :, y, x] = ((1 - ly) * (1 - lx) * conv[:, :, y0, x0] +
                                  (1 - ly) * lx * conv[:, :, y0, x1] +
                                  ly * (1 - lx) * conv[:, :, y1, x0] +
                                  ly * lx * conv[:, :, y1, x1])
        outs.append(up)
    return np.concatenate(outs, axis=1)


if __name__ == "__main__":
    # Small shapes consistent with the module (channels divisible by 4).
    B, C, H, W = 2, 8, 16, 16
    OC = C // 4

    key = jax.random.PRNGKey(0)
    k_feat, k_w1, k_w2, k_w3, k_w6 = jax.random.split(key, 5)
    feature = jax.random.normal(k_feat, (B, C, H, W), jnp.float32)
    # Conv2d(C, C//4, kernel_size=1, bias=False) weights -> shape (OC, C)
    conv_weights = [
        (jax.random.normal(k, (OC, C), jnp.float32) * (1.0 / np.sqrt(C)))
        for k in (k_w1, k_w2, k_w3, k_w6)
    ]

    ref = reference_ppm(np.asarray(feature), [np.asarray(w) for w in conv_weights])

    # f32 path (default): tight tolerance.
    out = jax.block_until_ready(pp_module_pallas(feature, conv_weights))
    assert out.shape == (B, 2 * C, H, W), out.shape
    np.testing.assert_allclose(np.asarray(out), ref, rtol=1e-4, atol=1e-4)

    # bf16 operand path (v6e/v7x optimization), f32 accumulation: relaxed tolerance.
    out_bf16 = jax.block_until_ready(
        pp_module_pallas(feature, conv_weights, compute_dtype=jnp.bfloat16))
    np.testing.assert_allclose(np.asarray(out_bf16), ref, rtol=5e-2, atol=5e-2)

    print("KERNEL_OK")
</pallas_src>

<mosaic_0001>
module attributes {stable_mosaic.version = 11 : i64} {
  func.func @ppm_pool_conv_kernel(%arg0: i32, %arg1: i32, %arg2: memref<1x8x256xf32, #tpu.memory_space<vmem>>, %arg3: memref<256x50xf32, #tpu.memory_space<vmem>>, %arg4: memref<8x8xf32, #tpu.memory_space<vmem>>, %arg5: memref<8x50xf32, #tpu.memory_space<vmem>>, %arg6: memref<1x8x50xf32, #tpu.memory_space<vmem>>, %arg7: memref<8x50xf32, #tpu.memory_space<vmem>>) attributes {dimension_semantics = [#tpu.dimension_semantics<parallel>, #tpu.dimension_semantics<arbitrary>], iteration_bounds = array<i64: 2, 1>, scalar_prefetch = 0 : i64, scratch_operands = 1 : i64, tpu.core_type = #tpu.core_type<tc>, window_params = [{transform_indices = @transform_0, window_bounds = array<i64: 1, 8, 256>}, {transform_indices = @transform_1, window_bounds = array<i64: 256, 50>}, {pipeline_mode = #tpu.pipeline_mode<synchronous>, transform_indices = @transform_2, window_bounds = array<i64: 8, 8>}, {pipeline_mode = #tpu.pipeline_mode<synchronous>, transform_indices = @transform_3, window_bounds = array<i64: 8, 50>}, {transform_indices = @transform_4, window_bounds = array<i64: 1, 8, 50>}]} {
    %c0_i32 = arith.constant 0 : i32
    %0 = arith.cmpi eq, %arg1, %c0_i32 : i32
    %1 = arith.extui %0 : i1 to i32
    %c0_i32_0 = arith.constant 0 : i32
    %2 = arith.cmpi ne, %1, %c0_i32_0 : i32
    scf.if %2 {
      %cst_11 = arith.constant 0.000000e+00 : f32
      %13 = vector.broadcast %cst_11 : f32 to vector<8x50xf32>
      %c0_12 = arith.constant 0 : index
      %c0_13 = arith.constant 0 : index
      %14 = vector.load %arg7[%c0_12, %c0_13] : memref<8x50xf32, #tpu.memory_space<vmem>>, vector<8x50xf32>
      tpu.vector_store %arg7[%c0_12, %c0_13], %13 {strides = array<i32>} : memref<8x50xf32, #tpu.memory_space<vmem>>, vector<8x50xf32>,
    } else {
    }
    %c0 = arith.constant 0 : index
    %c0_1 = arith.constant 0 : index
    %3 = vector.load %arg7[%c0, %c0_1] : memref<8x50xf32, #tpu.memory_space<vmem>>, vector<8x50xf32>
    %c0_2 = arith.constant 0 : index
    %c0_3 = arith.constant 0 : index
    %c0_4 = arith.constant 0 : index
    %4 = vector.load %arg2[%c0_2, %c0_3, %c0_4] : memref<1x8x256xf32, #tpu.memory_space<vmem>>, vector<1x8x256xf32>
    %5 = vector.shape_cast %4 : vector<1x8x256xf32> to vector<8x256xf32>
    %c0_5 = arith.constant 0 : index
    %c0_6 = arith.constant 0 : index
    %6 = vector.load %arg3[%c0_5, %c0_6] : memref<256x50xf32, #tpu.memory_space<vmem>>, vector<256x50xf32>
    %cst = arith.constant dense<0.000000e+00> : vector<8x50xf32>
    %7 = tpu.matmul %5, %6, %cst {dimension_numbers = #tpu.dot_dimension_numbers<[1], [0], [0], [1], [0, 0, 1, 1], [], []>} : vector<8x256xf32>, vector<256x50xf32>, vector<8x50xf32> -> vector<8x50xf32>
    %8 = arith.addf %3, %7 : vector<8x50xf32>
    %c0_7 = arith.constant 0 : index
    %c0_8 = arith.constant 0 : index
    %9 = vector.load %arg7[%c0_7, %c0_8] : memref<8x50xf32, #tpu.memory_space<vmem>>, vector<8x50xf32>
    tpu.vector_store %arg7[%c0_7, %c0_8], %8 {strides = array<i32>} : memref<8x50xf32, #tpu.memory_space<vmem>>, vector<8x50xf32>,
    %c0_i32_9 = arith.constant 0 : i32
    %10 = arith.cmpi eq, %arg1, %c0_i32_9 : i32
    %11 = arith.extui %10 : i1 to i32
    %c0_i32_10 = arith.constant 0 : i32
    %12 = arith.cmpi ne, %11, %c0_i32_10 : i32
    scf.if %12 {
      %c0_11 = arith.constant 0 : index
      %c0_12 = arith.constant 0 : index
      %13 = vector.load %arg7[%c0_11, %c0_12] : memref<8x50xf32, #tpu.memory_space<vmem>>, vector<8x50xf32>
      %c0_13 = arith.constant 0 : index
      %c0_14 = arith.constant 0 : index
      %14 = vector.load %arg4[%c0_13, %c0_14] : memref<8x8xf32, #tpu.memory_space<vmem>>, vector<8x8xf32>
      %cst_15 = arith.constant dense<0.000000e+00> : vector<8x50xf32>
      %15 = tpu.matmul %14, %13, %cst_15 {dimension_numbers = #tpu.dot_dimension_numbers<[1], [0], [0], [1], [0, 0, 1, 1], [], []>} : vector<8x8xf32>, vector<8x50xf32>, vector<8x50xf32> -> vector<8x50xf32>
      %c0_16 = arith.constant 0 : index
      %c0_17 = arith.constant 0 : index
      %16 = vector.load %arg5[%c0_16, %c0_17] : memref<8x50xf32, #tpu.memory_space<vmem>>, vector<8x50xf32>
      %17 = arith.mulf %15, %16 : vector<8x50xf32>
      %c0_18 = arith.constant 0 : index
      %c0_19 = arith.constant 0 : index
      %c0_20 = arith.constant 0 : index
      %18 = vector.load %arg6[%c0_18, %c0_19, %c0_20] : memref<1x8x50xf32, #tpu.memory_space<vmem>>, vector<1x8x50xf32>
      %19 = vector.shape_cast %18 : vector<1x8x50xf32> to vector<8x50xf32>
      %20 = vector.shape_cast %17 : vector<8x50xf32> to vector<1x8x50xf32>
      tpu.vector_store %arg6[%c0_18, %c0_19, %c0_20], %20 {strides = array<i32>} : memref<1x8x50xf32, #tpu.memory_space<vmem>>, vector<1x8x50xf32>,
    } else {
    }
    return
  }
  func.func @transform_0(%arg0: i32, %arg1: i32) -> (i32, i32, i32) {
    %c0_i32 = arith.constant 0 : i32
    %c0_i32_0 = arith.constant 0 : i32
    return %arg0, %c0_i32, %arg1 : i32, i32, i32
  }
  func.func @transform_1(%arg0: i32, %arg1: i32) -> (i32, i32) {
    %c0_i32 = arith.constant 0 : i32
    %c0_i32_0 = arith.constant 0 : i32
    return %arg1, %c0_i32 : i32, i32
  }
  func.func @transform_2(%arg0: i32, %arg1: i32) -> (i32, i32) {
    %c0_i32 = arith.constant 0 : i32
    %c0_i32_0 = arith.constant 0 : i32
    %c0_i32_1 = arith.constant 0 : i32
    return %c0_i32, %c0_i32_0 : i32, i32
  }
  func.func @transform_3(%arg0: i32, %arg1: i32) -> (i32, i32) {
    %c0_i32 = arith.constant 0 : i32
    %c0_i32_0 = arith.constant 0 : i32
    %c0_i32_1 = arith.constant 0 : i32
    return %c0_i32, %c0_i32_0 : i32, i32
  }
  func.func @transform_4(%arg0: i32, %arg1: i32) -> (i32, i32, i32) {
    %c0_i32 = arith.constant 0 : i32
    %c0_i32_0 = arith.constant 0 : i32
    %c0_i32_1 = arith.constant 0 : i32
    return %arg0, %c0_i32, %c0_i32_0 : i32, i32, i32
  }
}

</mosaic_0001>

<llo_original>
// kernel: tpu_custom_call.1
$region0: #{tpu_custom_call.1}
  #allocation0 [shape = 'u32[]', space=smem, size = 0x4, offset = 0x4, fixed_abs, tag = 'smem constant byte address 0x4 - core index']
  #allocation1 [shape = 'u32[144,128]{1,0:T(1,128)}', space=vmem, size = 0x12000, scoped, tag = 'internal scratch']
  #allocation2 [shape = 'f32[8,50]{1,0:T(8,128)}', space=vmem, size = 0x1000, scoped, tag = 'scratch operand']
  %s0 = inlined_call_operand.vmem [shape: f32[2,8,256], index: 0, kind: input, shape index: {}]
  %s1 = inlined_call_operand.vmem [shape: f32[256,50], index: 1, kind: input, shape index: {}]
  %s2 = inlined_call_operand.vmem [shape: f32[8,8], index: 2, kind: input, shape index: {}]
  %s3 = inlined_call_operand.vmem [shape: f32[8,50], index: 3, kind: input, shape index: {}]
  %s4 = inlined_call_operand.hbm [shape: f32[2,8,50], index: 4, kind: output, shape index: {}]
  %s5 = sld [smem:[#allocation0]]
  $region57: #{tpu_custom_call.1} parent=0
    _
  %s7 = ssub.s32 1, %s5
  %s8 = scalar_select 0, %s7, %s5
  $region1: #{tpu_custom_call.1} parent=0
    #allocation3 [shape = 'u8[8192]{0}', space=vmem, size = 0x2000, scoped, tag = 'output window, operand 0']
    #allocation4 [shape = 's32[2]{0}', space=sflag, size = 0x8, scoped, tag = 'scoped memory for tpu_custom_call.1']
    %9 = vsyncpa [#allocation4], 0
    %s10 = scalar_lea.sflag [#allocation4], 1
    %11 = vsyncpa %s10, 0
    loop: start=0, step=1, limit=4
    $region2: #{tpu_custom_call.1} parent=1 // loop_pre_header
      _
    $region3: #{tpu_custom_call.1} parent=1 // loop_header
      %s13 = sphi 0, %s17
      %p14 = scmp.ge.s32.totalorder %s13, 4
      %s20 = sphi 0, %s32
      %s21 = sphi 0, %s28
      %s22 = sphi 0, %s20
      %s23 = sphi 0, %s21
      %s24 = sphi 0, %s22
      %s25 = sphi 0, %s23
      %s37 = sphi 0, %s39
      %s40 = sphi 0, %s37
      %s41 = sphi 0, %s40
      %s57 = sphi 0, %s41
      %s63 = sphi 0, %s65
      %s66 = sphi 0, %s63
      %s67 = sphi 0, %s66
      %s83 = sphi 0, %s67
      %s87 = sphi 0, %s87
      %s89 = sphi 0, %s87
      %s90 = sphi 0, %s89
      %s104 = sphi 0, %s90
      %s108 = sphi 0, %s108
      %s110 = sphi 0, %s108
      %s111 = sphi 0, %s110
      %s125 = sphi 0, %s111
      %s131 = sphi 0, %s133
      %s134 = sphi 0, %s131
      %s135 = sphi 0, %s134
      %s151 = sphi 0, %s135
    $region4: #{tpu_custom_call.1} parent=1 // loop_header_branch
      %16 = sbr.rel (%p14) target = $region8
    $region5: #{tpu_custom_call.1} parent=1 // loop_body
      %s18 = ssub.s32 %s13, 1
      %s19 = ssub.s32 %s13, 2
      %s26 = sadd.s32 1, %s21
      %p27 = scmp.ge.s32.totalorder %s26, 1
      %s28 = scalar_select %p27, 0, %s26
      %s29 = sadd.s32 1, %s20
      %s30 = scalar_select %p27, %s29, %s20
      %p31 = scmp.ge.s32.totalorder %s30, 2
      %s32 = scalar_select %p31, 0, %s30
      %s33 = ssub.s32 %s20, %s32
      %s34 = ssub.s32 %s21, %s28
      %s35 = sor.u32 %s33, %s34
      %p36 = scmp.eq.s32.totalorder %s35, 0
      %s38 = sadd.s32 %s37, 1
      %s39 = scalar_select %p36, %s37, %s38
      %p42 = pneg %p36
      %p43 = scmp.eq.s32.totalorder %s13, 1
      %p44 = por %p42, %p43
      %p45 = scmp.ne.s32.totalorder %s37, %s40
      %p46 = scmp.eq.s32.totalorder %s13, 0
      %p47 = por %p45, %p46
      %p48 = scmp.ne.s32.totalorder %s37, %s40
      %p49 = scmp.eq.s32.totalorder %s18, 1
      %p50 = por %p48, %p49
      %p51 = scmp.ne.s32.totalorder %s40, %s41
      %p52 = scmp.eq.s32.totalorder %s18, 0
      %p53 = por %p51, %p52
      %p54 = scmp.ne.s32.totalorder %s40, %s41
      %p55 = scmp.eq.s32.totalorder %s19, 1
      %p56 = por %p54, %p55
      %p58 = scmp.ne.s32.totalorder %s41, %s57
      %p59 = scmp.eq.s32.totalorder %s19, 0
      %p60 = por %p58, %p59
      %s61 = ssub.s32 %s21, %s28
      %p62 = scmp.eq.s32.totalorder %s61, 0
      %s64 = sadd.s32 %s63, 1
      %s65 = scalar_select %p62, %s63, %s64
      %p68 = pneg %p62
      %p69 = scmp.eq.s32.totalorder %s13, 1
      %p70 = por %p68, %p69
      %p71 = scmp.ne.s32.totalorder %s63, %s66
      %p72 = scmp.eq.s32.totalorder %s13, 0
      %p73 = por %p71, %p72
      %p74 = scmp.ne.s32.totalorder %s63, %s66
      %p75 = scmp.eq.s32.totalorder %s18, 1
      %p76 = por %p74, %p75
      %p77 = scmp.ne.s32.totalorder %s66, %s67
      %p78 = scmp.eq.s32.totalorder %s18, 0
      %p79 = por %p77, %p78
      %p80 = scmp.ne.s32.totalorder %s66, %s67
      %p81 = scmp.eq.s32.totalorder %s19, 1
      %p82 = por %p80, %p81
      %p84 = scmp.ne.s32.totalorder %s67, %s83
      %p85 = scmp.eq.s32.totalorder %s19, 0
      %p86 = por %p84, %p85
      %s88 = sadd.s32 %s87, 1
      %p91 = scmp.eq.s32.totalorder %s13, 1
      %p92 = scmp.ne.s32.totalorder %s87, %s89
      %p93 = scmp.eq.s32.totalorder %s13, 0
      %p94 = por %p92, %p93
      %p95 = scmp.ne.s32.totalorder %s87, %s89
      %p96 = scmp.eq.s32.totalorder %s18, 1
      %p97 = por %p95, %p96
      %p98 = scmp.ne.s32.totalorder %s89, %s90
      %p99 = scmp.eq.s32.totalorder %s18, 0
      %p100 = por %p98, %p99
      %p101 = scmp.ne.s32.totalorder %s89, %s90
      %p102 = scmp.eq.s32.totalorder %s19, 1
      %p103 = por %p101, %p102
      %p105 = scmp.ne.s32.totalorder %s90, %s104
      %p106 = scmp.eq.s32.totalorder %s19, 0
      %p107 = por %p105, %p106
      %s109 = sadd.s32 %s108, 1
      %p112 = scmp.eq.s32.totalorder %s13, 1
      %p113 = scmp.ne.s32.totalorder %s108, %s110
      %p114 = scmp.eq.s32.totalorder %s13, 0
      %p115 = por %p113, %p114
      %p116 = scmp.ne.s32.totalorder %s108, %s110
      %p117 = scmp.eq.s32.totalorder %s18, 1
      %p118 = por %p116, %p117
      %p119 = scmp.ne.s32.totalorder %s110, %s111
      %p120 = scmp.eq.s32.totalorder %s18, 0
      %p121 = por %p119, %p120
      %p122 = scmp.ne.s32.totalorder %s110, %s111
      %p123 = scmp.eq.s32.totalorder %s19, 1
      %p124 = por %p122, %p123
      %p126 = scmp.ne.s32.totalorder %s111, %s125
      %p127 = scmp.eq.s32.totalorder %s19, 0
      %p128 = por %p126, %p127
      %s129 = ssub.s32 %s20, %s32
      %p130 = scmp.eq.s32.totalorder %s129, 0
      %s132 = sadd.s32 %s131, 1
      %s133 = scalar_select %p130, %s131, %s132
      %p136 = pneg %p130
      %p137 = scmp.eq.s32.totalorder %s13, 1
      %p138 = por %p136, %p137
      %p139 = scmp.ne.s32.totalorder %s131, %s134
      %p140 = scmp.eq.s32.totalorder %s13, 0
      %p141 = por %p139, %p140
      %p142 = scmp.ne.s32.totalorder %s131, %s134
      %p143 = scmp.eq.s32.totalorder %s18, 1
      %p144 = por %p142, %p143
      %p145 = scmp.ne.s32.totalorder %s134, %s135
      %p146 = scmp.eq.s32.totalorder %s18, 0
      %p147 = por %p145, %p146
      %p148 = scmp.ne.s32.totalorder %s134, %s135
      %p149 = scmp.eq.s32.totalorder %s19, 1
      %p150 = por %p148, %p149
      %p152 = scmp.ne.s32.totalorder %s135, %s151
      %p153 = scmp.eq.s32.totalorder %s19, 0
      %p154 = por %p152, %p153
      %p155 = scmp.le.s32.totalorder 1, %s13
      %p156 = scmp.lt.s32.totalorder %s13, 3
      %p157 = pnand %p155, %p156
      %p158 = pneg %p157
      // Predicated region
      $region9: #{tpu_custom_call.1} parent=5 // pred_check
        _
      $region10: #{tpu_custom_call.1} parent=5 // pred_check_branch
        %160 = sbr.rel (%p157) target = $region12
      $region11: #{tpu_custom_call.1} parent=5 // pred_region
        %s161 = ssub.s32 %s13, 1
        // Predicated region
        $region13: #{tpu_custom_call.1} parent=11 // pred_check
          %p162 = pneg %p79
        $region14: #{tpu_custom_call.1} parent=11 // pred_check_branch
          %164 = sbr.rel (%p162) target = $region16
        $region15: #{tpu_custom_call.1} parent=11 // pred_region
          %s165 = smul.u32 32, %s23
          %p166 = scmp.lt.s32.totalorder %s165, 31
          %s167 = scalar_select %p166, %s165, 31
          %s168 = smul.addr %s167, 8
          %s169 = scalar_lea.vmem %s1, %s168
          %s170 = smul.u32 32, %s23
        $region16: #{tpu_custom_call.1} parent=11 // pred_fallthru
          _
        // Predicated region
        $region17: #{tpu_custom_call.1} parent=11 // pred_check
          %p171 = pneg %p100
        $region18: #{tpu_custom_call.1} parent=11 // pred_check_branch
          %173 = sbr.rel (%p171) target = $region20
        $region19: #{tpu_custom_call.1} parent=11 // pred_region
          _
        $region20: #{tpu_custom_call.1} parent=11 // pred_fallthru
          _
        // Predicated region
        $region21: #{tpu_custom_call.1} parent=11 // pred_check
          %p174 = pneg %p121
        $region22: #{tpu_custom_call.1} parent=11 // pred_check_branch
          %176 = sbr.rel (%p174) target = $region24
        $region23: #{tpu_custom_call.1} parent=11 // pred_region
          _
        $region24: #{tpu_custom_call.1} parent=11 // pred_fallthru
          _
      $region12: #{tpu_custom_call.1} parent=5 // pred_fallthru
        _
      %p177 = scmp.lt.s32.totalorder %s13, 2
      // Predicated region
      $region25: #{tpu_custom_call.1} parent=5 // pred_check
        %p178 = pneg %p177
      $region26: #{tpu_custom_call.1} parent=5 // pred_check_branch
        %180 = sbr.rel (%p178) target = $region28
      $region27: #{tpu_custom_call.1} parent=5 // pred_region
        // Predicated region
        $region29: #{tpu_custom_call.1} parent=27 // pred_check
          %p181 = pneg %p47
        $region30: #{tpu_custom_call.1} parent=27 // pred_check_branch
          %183 = sbr.rel (%p181) target = $region32
        $region31: #{tpu_custom_call.1} parent=27 // pred_region
          %s184 = smul.u32 2, %s21
          %p185 = scmp.lt.s32.totalorder %s20, 1
          %s186 = scalar_select %p185, %s20, 1
          %p187 = scmp.lt.s32.totalorder %s184, 1
          %s188 = scalar_select %p187, %s184, 1
          %s189 = smul.addr %s186, 2
          %s190 = sadd.s32 %s188, %s189
          %s191 = smul.addr %s190, 8
          %s192 = scalar_lea.vmem %s0, %s191
          %s193 = smul.u32 2, %s21
        $region32: #{tpu_custom_call.1} parent=27 // pred_fallthru
          _
      $region28: #{tpu_custom_call.1} parent=5 // pred_fallthru
        _
      %p194 = scmp.le.s32.totalorder 1, %s13
      %p195 = scmp.lt.s32.totalorder %s13, 3
      %p196 = pnand %p194, %p195
      %p197 = pneg %p196
      // Predicated region
      $region33: #{tpu_custom_call.1} parent=5 // pred_check
        _
      $region34: #{tpu_custom_call.1} parent=5 // pred_check_branch
        %199 = sbr.rel (%p196) target = $region36
      $region35: #{tpu_custom_call.1} parent=5 // pred_region
        %s200 = ssub.s32 %s13, 1
        %s201 = smul.u32 2, %s23
        %p202 = scmp.lt.s32.totalorder %s22, 1
        %s203 = scalar_select %p202, %s22, 1
        %p204 = scmp.lt.s32.totalorder %s201, 1
        %s205 = scalar_select %p204, %s201, 1
        %s206 = smul.addr %s203, 2
        %s207 = sadd.s32 %s205, %s206
        %s208 = smul.addr %s207, 8
        %s209 = scalar_lea.vmem %s0, %s208
        %p210 = pneg %p53
        %p211 = pneg %p50
        %s212 = smul.u32 32, %s23
        %p213 = scmp.lt.s32.totalorder %s212, 31
        %s214 = scalar_select %p213, %s212, 31
        %s215 = smul.addr %s214, 8
        %s216 = scalar_lea.vmem %s1, %s215
        %p217 = pneg %p79
        %p218 = pneg %p76
        %p219 = pneg %p100
        %p220 = pneg %p97
        %p221 = pneg %p121
        %p222 = pneg %p118
        %p223 = pneg %p147
        %p224 = pneg %p144
        %s225 = sand.u32 %s134, 1
        %s226 = scalar_lea.sflag [#allocation4], %s225
        %s227 = sand.u32 %s134, 1
        %s228 = smul.addr %s227, 8
        %s229 = scalar_lea.vmem [#allocation3], %s228
        %s230 = smul.u32 2, %s23
        %p231 = scmp.lt.s32.totalorder %s22, 1
        %s232 = scalar_select %p231, %s22, 1
        %p233 = scmp.lt.s32.totalorder %s230, 1
        %s234 = scalar_select %p233, %s230, 1
        %s235 = smul.addr %s232, 2
        %s236 = sadd.s32 %s234, %s235
        %s237 = smul.addr %s236, 8
        %s238 = scalar_lea.vmem %s0, %s237
        %s239 = smul.u32 2, %s23
        %s240 = smul.u32 32, %s23
        %p241 = scmp.lt.s32.totalorder %s240, 31
        %s242 = scalar_select %p241, %s240, 31
        %s243 = smul.addr %s242, 8
        %s244 = scalar_lea.vmem %s1, %s243
        %s245 = smul.u32 32, %s23
        %p246 = scmp.eq.s32.totalorder %s23, 0
        // Predicated region
        $region37: #{tpu_custom_call.1} parent=35 // pred_check
          %p247 = pneg %p246
        $region38: #{tpu_custom_call.1} parent=35 // pred_check_branch
          %249 = sbr.rel (%p247) target = $region40
        $region39: #{tpu_custom_call.1} parent=35 // pred_region
          %vm250 = vcmask 408576
          %251 = vst.msk [vmem:[#allocation2] sm:$0xff] %vm250, 0.0
        $region40: #{tpu_custom_call.1} parent=35 // pred_fallthru
          _
        %v252 = vld [vmem:[#allocation2] sm:$0xff]
        %v253 = vld [vmem:[%s238] sm:$0xff]
        %v254 = vld [vmem:[%s238 + $0x8] sm:$0xff]
        %v255 = vld [vmem:[%s244] sm:$0xff]
        %v256 = vld [vmem:[%s244 + $0x8] sm:$0xff]
        %v257 = vld [vmem:[%s244 + $0x10] sm:$0xff]
        %v258 = vld [vmem:[%s244 + $0x18] sm:$0xff]
        %v259 = vld [vmem:[%s244 + $0x20] sm:$0xff]
        %v260 = vld [vmem:[%s244 + $0x28] sm:$0xff]
        %v261 = vld [vmem:[%s244 + $0x30] sm:$0xff]
        %v262 = vld [vmem:[%s244 + $0x38] sm:$0xff]
        %v263 = vld [vmem:[%s244 + $0x40] sm:$0xff]
        %v264 = vld [vmem:[%s244 + $0x48] sm:$0xff]
        %v265 = vld [vmem:[%s244 + $0x50] sm:$0xff]
        %v266 = vld [vmem:[%s244 + $0x58] sm:$0xff]
        %v267 = vld [vmem:[%s244 + $0x60] sm:$0xff]
        %v268 = vld [vmem:[%s244 + $0x68] sm:$0xff]
        %v269 = vld [vmem:[%s244 + $0x70] sm:$0xff]
        %v270 = vld [vmem:[%s244 + $0x78] sm:$0xff]
        %v271 = vld [vmem:[%s244 + $0x80] sm:$0xff]
        %v272 = vld [vmem:[%s244 + $0x88] sm:$0xff]
        %v273 = vld [vmem:[%s244 + $0x90] sm:$0xff]
        %v274 = vld [vmem:[%s244 + $0x98] sm:$0xff]
        %v275 = vld [vmem:[%s244 + $0xa0] sm:$0xff]
        %v276 = vld [vmem:[%s244 + $0xa8] sm:$0xff]
        %v277 = vld [vmem:[%s244 + $0xb0] sm:$0xff]
        %v278 = vld [vmem:[%s244 + $0xb8] sm:$0xff]
        %v279 = vld [vmem:[%s244 + $0xc0] sm:$0xff]
        %v280 = vld [vmem:[%s244 + $0xc8] sm:$0xff]
        %v281 = vld [vmem:[%s244 + $0xd0] sm:$0xff]
        %v282 = vld [vmem:[%s244 + $0xd8] sm:$0xff]
        %v283 = vld [vmem:[%s244 + $0xe0] sm:$0xff]
        %v284 = vld [vmem:[%s244 + $0xe8] sm:$0xff]
        %v285 = vld [vmem:[%s244 + $0xf0] sm:$0xff]
        %v286 = vld [vmem:[%s244 + $0xf8] sm:$0xff]
        %287 = vmatprep.subr.mxu0 0.0
        %288 = vmatpush1.msra.mxu0 %v255
        %289 = vmatprep.subr.mxu0 0.0
        %290 = vmatpush1.msra.mxu0 %v256
        %291 = vmatprep.subr.mxu0 0.0
        %292 = vmatpush1.msra.mxu0 %v257
        %293 = vmatprep.subr.mxu0 0.0
        %294 = vmatpush1.msra.mxu0 %v258
        %295 = vmatprep.subr.mxu0 0.0
        %296 = vmatpush1.msra.mxu0 %v259
        %297 = vmatprep.subr.mxu0 0.0
        %298 = vmatpush1.msra.mxu0 %v260
        %299 = vmatprep.subr.mxu0 0.0
        %300 = vmatpush1.msra.mxu0 %v261
        %301 = vmatprep.subr.mxu0 0.0
        %302 = vmatpush1.msra.mxu0 %v262
        %303 = vmatprep.subr.mxu0 0.0
        %304 = vmatpush1.msra.mxu0 %v263
        %305 = vmatprep.subr.mxu0 0.0
        %306 = vmatpush1.msra.mxu0 %v264
        %307 = vmatprep.subr.mxu0 0.0
        %308 = vmatpush1.msra.mxu0 %v265
        %309 = vmatprep.subr.mxu0 0.0
        %310 = vmatpush1.msra.mxu0 %v266
        %311 = vmatprep.subr.mxu0 0.0
        %312 = vmatpush1.msra.mxu0 %v267
        %313 = vmatprep.subr.mxu0 0.0
        %314 = vmatpush1.msra.mxu0 %v268
        %315 = vmatprep.subr.mxu0 0.0
        %316 = vmatpush1.msra.mxu0 %v269
        %317 = vmatprep.subr.mxu0 0.0
        %318 = vmatpush1.msra.mxu0 %v270
        %319 = vmatprep.subr.mxu0 0.0
        %320 = vmatpush1.msra.mxu0 %v271
        %321 = vmatprep.subr.mxu0 0.0
        %322 = vmatpush1.msra.mxu0 %v272
        %323 = vmatprep.subr.mxu0 0.0
        %324 = vmatpush1.msra.mxu0 %v273
        %325 = vmatprep.subr.mxu0 0.0
        %326 = vmatpush1.msra.mxu0 %v274
        %327 = vmatprep.subr.mxu0 0.0
        %328 = vmatpush1.msra.mxu0 %v275
        %329 = vmatprep.subr.mxu0 0.0
        %330 = vmatpush1.msra.mxu0 %v276
        %331 = vmatprep.subr.mxu0 0.0
        %332 = vmatpush1.msra.mxu0 %v277
        %333 = vmatprep.subr.mxu0 0.0
        %334 = vmatpush1.msra.mxu0 %v278
        %335 = vmatprep.subr.mxu0 0.0
        %336 = vmatpush1.msra.mxu0 %v279
        %337 = vmatprep.subr.mxu0 0.0
        %338 = vmatpush1.msra.mxu0 %v280
        %339 = vmatprep.subr.mxu0 0.0
        %340 = vmatpush1.msra.mxu0 %v281
        %341 = vmatprep.subr.mxu0 0.0
        %342 = vmatpush1.msra.mxu0 %v282
        %343 = vmatprep.subr.mxu0 0.0
        %344 = vmatpush1.msra.mxu0 %v283
        %345 = vmatprep.subr.mxu0 0.0
        %346 = vmatpush1.msra.mxu0 %v284
        %347 = vmatprep.subr.mxu0 0.0
        %348 = vmatpush1.msra.mxu0 %v285
        %349 = vmatprep.subr.mxu0 0.0
        %350 = vmatpush1.msra.mxu0 %v286
        %351 = vmatprep.mubr.f32.mxu0 %v254
        %352 = vmatmul.mubr.f32.gmra.mrb[0].mxu0 %v253
        %v353 = vpop.f32.mrb[0].mxu0
        %v354 = vadd.f32 0.0, %v353
        %v355 = vpop.f32.mrb[0].mxu0
        %356 = vdwg.mxu0
        %v357 = vadd.f32 %v252, %v354
        %vm358 = vcmask 408576
        %359 = vst.msk [vmem:[#allocation2] sm:$0xff] %vm358, %v357
        // Predicated region
        $region41: #{tpu_custom_call.1} parent=35 // pred_check
          %p360 = pneg %p246
        $region42: #{tpu_custom_call.1} parent=35 // pred_check_branch
          %362 = sbr.rel (%p360) target = $region44
        $region43: #{tpu_custom_call.1} parent=35 // pred_region
          %v363 = vld [vmem:[#allocation2] sm:$0xff]
          %v364 = vld [vmem:[%s2] sm:$0xff]
          %vm365 = vcmask 64512
          %v367 = vsel %vm365, %v364, 0
          %369 = vmatprep.subr.mxu0 0.0
          %370 = vmatpush1.msra.mxu0 %v363
          %371 = vmatprep.subr.mxu0 0.0
          %372 = vmatpush1.msra.mxu0 0.0
          %373 = vmatprep.subr.mxu0 0.0
          %374 = vmatpush1.msra.mxu0 0.0
          %375 = vmatprep.subr.mxu0 0.0
          %376 = vmatpush1.msra.mxu0 0.0
          %377 = vmatprep.subr.mxu0 0.0
          %378 = vmatpush1.msra.mxu0 0.0
          %379 = vmatprep.subr.mxu0 0.0
          %380 = vmatpush1.msra.mxu0 0.0
          %381 = vmatprep.subr.mxu0 0.0
          %382 = vmatpush1.msra.mxu0 0.0
          %383 = vmatprep.subr.mxu0 0.0
          %384 = vmatpush1.msra.mxu0 0.0
          %385 = vmatprep.subr.mxu0 0.0
          %386 = vmatpush1.msra.mxu0 0.0
          %387 = vmatprep.subr.mxu0 0.0
          %388 = vmatpush1.msra.mxu0 0.0
          %389 = vmatprep.subr.mxu0 0.0
          %390 = vmatpush1.msra.mxu0 0.0
          %391 = vmatprep.subr.mxu0 0.0
          %392 = vmatpush1.msra.mxu0 0.0
          %393 = vmatprep.subr.mxu0 0.0
          %394 = vmatpush1.msra.mxu0 0.0
          %395 = vmatprep.subr.mxu0 0.0
          %396 = vmatpush1.msra.mxu0 0.0
          %397 = vmatprep.subr.mxu0 0.0
          %398 = vmatpush1.msra.mxu0 0.0
          %399 = vmatprep.subr.mxu0 0.0
          %400 = vmatpush1.msra.mxu0 0.0
          %401 = vmatprep.subr.mxu0 0.0
          %402 = vmatpush1.msra.mxu0 0.0
          %403 = vmatprep.subr.mxu0 0.0
          %404 = vmatpush1.msra.mxu0 0.0
          %405 = vmatprep.subr.mxu0 0.0
          %406 = vmatpush1.msra.mxu0 0.0
          %407 = vmatprep.subr.mxu0 0.0
          %408 = vmatpush1.msra.mxu0 0.0
          %409 = vmatprep.subr.mxu0 0.0
          %410 = vmatpush1.msra.mxu0 0.0
          %411 = vmatprep.subr.mxu0 0.0
          %412 = vmatpush1.msra.mxu0 0.0
          %413 = vmatprep.subr.mxu0 0.0
          %414 = vmatpush1.msra.mxu0 0.0
          %415 = vmatprep.subr.mxu0 0.0
          %416 = vmatpush1.msra.mxu0 0.0
          %417 = vmatprep.subr.mxu0 0.0
          %418 = vmatpush1.msra.mxu0 0.0
          %419 = vmatprep.subr.mxu0 0.0
          %420 = vmatpush1.msra.mxu0 0.0
          %421 = vmatprep.subr.mxu0 0.0
          %422 = vmatpush1.msra.mxu0 0.0
          %423 = vmatprep.subr.mxu0 0.0
          %424 = vmatpush1.msra.mxu0 0.0
          %425 = vmatprep.subr.mxu0 0.0
          %426 = vmatpush1.msra.mxu0 0.0
          %427 = vmatprep.subr.mxu0 0.0
          %428 = vmatpush1.msra.mxu0 0.0
          %429 = vmatprep.subr.mxu0 0.0
          %430 = vmatpush1.msra.mxu0 0.0
          %431 = vmatprep.subr.mxu0 0.0
          %432 = vmatpush1.msra.mxu0 0.0
          %433 = vmatprep.mubr.f32.mxu0 0.0
          %434 = vmatmul.mubr.f32.gmra.mrb[0].mxu0 %v367
          %v435 = vpop.f32.mrb[0].mxu0
          %v436 = vadd.f32 0.0, %v435
          %v437 = vpop.f32.mrb[0].mxu0
          %438 = vdwg.mxu0
          %v439 = vld [vmem:[%s3] sm:$0xff]
          %v440 = vmul.f32 %v436, %v439
          %441 = vst.msk [vmem:[%s229] sm:$0xff] %vm358, %v440
        $region44: #{tpu_custom_call.1} parent=35 // pred_fallthru
          _
        %s442 = sand.u32 %s134, 1
        %s443 = scalar_lea.sflag [#allocation4], %s442
        %s444 = sand.u32 %s134, 1
        %s445 = smul.addr %s444, 8
        %s446 = scalar_lea.vmem [#allocation3], %s445
        // Predicated region
        $region45: #{tpu_custom_call.1} parent=35 // pred_check
          %p447 = pneg %p144
        $region46: #{tpu_custom_call.1} parent=35 // pred_check_branch
          %449 = sbr.rel (%p447) target = $region48
        $region47: #{tpu_custom_call.1} parent=35 // pred_region
          %s451 = ssub.s32 128, 128
          %452 = vsyncadd %s443, %s451
          %s453 = smul.addr %s22, 128
          %s454 = scalar_lea.hbm %s4, %s453
          %s456 = sshll.u32 %s446, 4
          %s457 = int_to_ptr.vmem [resolvable:$true] %s456
          %459 = dma.vmem_to_hbm [thread:$0]  %s457, 128, %s454, %s443
        $region48: #{tpu_custom_call.1} parent=35 // pred_fallthru
          _
      $region36: #{tpu_custom_call.1} parent=5 // pred_fallthru
        _
      %p460 = scmp.le.s32.totalorder 2, %s13
      // Predicated region
      $region49: #{tpu_custom_call.1} parent=5 // pred_check
        %p461 = pneg %p460
      $region50: #{tpu_custom_call.1} parent=5 // pred_check_branch
        %463 = sbr.rel (%p461) target = $region52
      $region51: #{tpu_custom_call.1} parent=5 // pred_region
        %s464 = ssub.s32 %s13, 2
        // Predicated region
        $region53: #{tpu_custom_call.1} parent=51 // pred_check
          %p465 = pneg %p150
        $region54: #{tpu_custom_call.1} parent=51 // pred_check_branch
          %467 = sbr.rel (%p465) target = $region56
        $region55: #{tpu_custom_call.1} parent=51 // pred_region
          %s468 = sand.u32 %s135, 1
          %s469 = scalar_lea.sflag [#allocation4], %s468
          %s470 = sand.u32 %s135, 1
          %s471 = smul.addr %s470, 8
          %s472 = scalar_lea.vmem [#allocation3], %s471
          %473 = dma.done %s469, 128
        $region56: #{tpu_custom_call.1} parent=51 // pred_fallthru
          _
      $region52: #{tpu_custom_call.1} parent=5 // pred_fallthru
        _
    $region6: #{tpu_custom_call.1} parent=1 // loop_footer
      %s17 = sadd.s32 1, %s13
    $region7: #{tpu_custom_call.1} parent=1 // loop_footer_branch
      %12 = sbr.rel target = $region3
    $region8: #{tpu_custom_call.1} parent=1 // loop_exit
      _
    %474 = vsyncpa [#allocation4], 1
    %s475 = scalar_lea.sflag [#allocation4], 1
    %476 = vsyncpa %s475, 1

</llo_original>
